<compile_context>
chip_gen: v5e
topology: v5e:2x2
jax: 0.10.0
libtpu: 0.0.40
codegen_flags: <defaults>
</compile_context>

<pallas_src>
import jax
import jax.numpy as jnp
from jax.experimental import pallas as pl
from jax.experimental.pallas import tpu as pltpu


def _cdiv(a, b):
    return (a + b - 1) // b


def _round_up(a, b):
    return _cdiv(a, b) * b


# Max lanes per tile.  In the channels-on-sublane layout each step's buffers
# (x + y + out double-buffered + concat scratch) are ~7 MiB at tm=32768 ->
# safely under the scoped-VMEM defaults on v5e/v6e (16/32 MiB) and v7x (32 MiB).
_DEFAULT_MAX_TM = 32768


def _cores_per_chip():
    """Best-effort TensorCores-per-chip detection (megacore gating)."""
    try:
        d = jax.devices()[0]
        kind = (getattr(d, "device_kind", "") or "").lower()
        if "v7" in kind:                      # v7x: 2 TensorCores share the grid
            return 2
        nc = getattr(d, "num_cores", None)
        if isinstance(nc, int) and nc > 1:
            return nc
    except Exception:
        pass
    return 1                                  # v5e / v6e: single TensorCore


def _choose_tm(m, n_batch_blocks, cores, max_tm=_DEFAULT_MAX_TM):
    """Largest tile that fits; only split/balance when >1 TensorCore exists."""
    tm = m if m <= max_tm else max_tm         # full extent or multiple of 128
    if cores >= 2 and m >= 256:
        steps = n_batch_blocks * _cdiv(m, tm)
        if steps < 2 or steps % 2 != 0:
            # Make the total step count even (and >= 2) so both TensorCores
            # get balanced work; keep tiles 128-aligned.
            tiles = max(2, _cdiv(m, tm) + 1)
            while (n_batch_blocks * tiles) % 2 != 0:
                tiles += 1
            tm = min(tm, _round_up(_cdiv(m, tiles), 128))
    return tm


def _cat_conv_bn_relu_kernel(x_ref, y_ref, w_ref, bias_ref, o_ref, z_ref):
    # x_ref: (NB, Cx, tM)   y_ref: (NB, Cy, tM)
    # w_ref: (Cout, Cx+Cy)  -- concatenated 1x1-conv weight, BN scale folded in
    # bias_ref: (Cout, 1)   -- conv bias + BN shift folded
    # o_ref: (NB, Cout, tM)
    # z_ref: VMEM scratch (Cx+Cy, tM) staging the fused channel concat.
    nb, cx, _ = x_ref.shape
    cy = y_ref.shape[1]
    w = w_ref[...]
    bias = bias_ref[...]
    for b in range(nb):                       # static unroll (NB is 1 or small)
        # Fused concat: stage both sources in one VMEM buffer (no HBM concat).
        z_ref[0:cx, :] = x_ref[b]
        z_ref[cx:cx + cy, :] = y_ref[b]
        # Single K = Cx+Cy MXU contraction (was two tiny-K dots before).
        acc = jnp.dot(w, z_ref[...], preferred_element_type=jnp.float32)
        acc = acc + bias                      # lane-broadcast of (Cout, 1)
        o_ref[b] = jnp.maximum(acc, 0.0).astype(o_ref.dtype)   # ReLU


def cat_conv_bn_relu(x, y, w, bias, *, max_tm=_DEFAULT_MAX_TM):
    """x: (N, Cx, M), y: (N, Cy, M), w: (Cout, Cx+Cy), bias: (Cout, 1)."""
    n, cx, m = x.shape
    ny, cy, my = y.shape
    assert (n, m) == (ny, my)
    cout = w.shape[0]
    cin = cx + cy
    assert w.shape[1] == cin

    cores = _cores_per_chip()

    # Small-input regime: fold the whole batch into one block so per-step
    # overhead (~0.35us) is paid once instead of N times.
    fold_batch = (n * m <= max_tm) and (n <= 16) and (cores == 1 or n == 1)
    nb = n if fold_batch else 1
    n_blocks = n // nb

    tm = _choose_tm(m, n_blocks, cores, max_tm)
    grid = (n_blocks, _cdiv(m, tm))           # ragged last tile handled by Pallas

    return pl.pallas_call(
        _cat_conv_bn_relu_kernel,
        out_shape=jax.ShapeDtypeStruct((n, cout, m), jnp.float32),
        grid_spec=pltpu.PrefetchScalarGridSpec(
            num_scalar_prefetch=0,
            grid=grid,
            in_specs=[
                pl.BlockSpec((nb, cx, tm), lambda i, t: (i, 0, t)),
                pl.BlockSpec((nb, cy, tm), lambda i, t: (i, 0, t)),
                pl.BlockSpec((cout, cin), lambda i, t: (0, 0)),
                pl.BlockSpec((cout, 1), lambda i, t: (0, 0)),
            ],
            out_specs=pl.BlockSpec((nb, cout, tm), lambda i, t: (i, 0, t)),
            scratch_shapes=[pltpu.VMEM((cin, tm), jnp.float32)],
        ),
        compiler_params=pltpu.CompilerParams(
            dimension_semantics=("parallel", "parallel")),
    )(x, y, w, bias)


class CatModule:
    """JAX/Pallas equivalent of FCCDN `cat` (deterministic synthetic params)."""

    def __init__(self, in_chn_high, in_chn_low, out_chn, upsample=False,
                 key=jax.random.PRNGKey(0)):
        self.do_upsample = upsample
        self.in_chn_high = in_chn_high
        self.in_chn_low = in_chn_low
        self.out_chn = out_chn

        kw, kb, kg, kbeta = jax.random.split(key, 4)
        cin = in_chn_high + in_chn_low
        # Conv2d(cin, out_chn, k=1) weight (out, cin) and bias (out,)
        w = jax.random.normal(kw, (out_chn, cin), jnp.float32) * 0.1
        conv_b = jax.random.normal(kb, (out_chn,), jnp.float32) * 0.1
        # BatchNorm2d params (eval mode)
        gamma = 1.0 + 0.1 * jax.random.normal(kg, (out_chn,), jnp.float32)
        beta = 0.1 * jax.random.normal(kbeta, (out_chn,), jnp.float32)
        running_mean = jnp.zeros((out_chn,), jnp.float32)
        running_var = jnp.ones((out_chn,), jnp.float32)
        eps = 1e-5

        # Fold BN: y = gamma * (conv(x)+b - mean)/sqrt(var+eps) + beta
        bn_scale = gamma / jnp.sqrt(running_var + eps)          # (Cout,)
        bn_bias = beta + (conv_b - running_mean) * bn_scale     # (Cout,)

        # Single concatenated weight (channel order = [x; y], matching
        # torch.cat((x, y), 1)) with BN scale folded in.
        self.w = w * bn_scale[:, None]                          # (Cout, Cin)
        self.bias = bn_bias.reshape(out_chn, 1)                 # (Cout, 1)

        # Raw params for the pure-JAX reference.
        self._w = w
        self._conv_b = conv_b
        self._bn = (gamma, beta, running_mean, running_var, eps)

    @staticmethod
    def _upsample2x(x):
        # Single-copy 2x nearest upsample (broadcast + reshape) — matches
        # torch.nn.Upsample(scale_factor=2, mode='nearest').
        n, c, h, w = x.shape
        x = jnp.broadcast_to(x[:, :, :, None, :, None], (n, c, h, 2, w, 2))
        return x.reshape(n, c, 2 * h, 2 * w)

    def __call__(self, x, y):
        # x: (N, Cx, Hx, Wx) NCHW, y: (N, Cy, H, W) NCHW
        if self.do_upsample:
            x = self._upsample2x(x)
        n, cx, h, w = x.shape
        ny, cy, hy, wy_ = y.shape
        assert (n, h, w) == (ny, hy, wy_)

        m = h * w
        # Free, layout-preserving reshapes (no NCHW<->NHWC transposes).
        xr = x.reshape(n, cx, m)
        yr = y.reshape(n, cy, m)
        out = cat_conv_bn_relu(xr, yr, self.w, self.bias)
        return out.reshape(n, self.out_chn, h, w)

    def reference(self, x, y):
        """Pure-JAX reference matching PyTorch eval-mode semantics."""
        if self.do_upsample:
            x = jnp.repeat(jnp.repeat(x, 2, axis=2), 2, axis=3)
        z = jnp.concatenate([x, y], axis=1)                     # (N,Cin,H,W)
        conv = jnp.einsum('nchw,oc->nohw', z, self._w) + \
            self._conv_b[None, :, None, None]
        gamma, beta, mean, var, eps = self._bn
        bn = (conv - mean[None, :, None, None]) / \
            jnp.sqrt(var[None, :, None, None] + eps)
        bn = bn * gamma[None, :, None, None] + beta[None, :, None, None]
        return jnp.maximum(bn, 0.0)


if __name__ == "__main__":
    key = jax.random.PRNGKey(0)
    kx1, ky1, kp1, kx2, ky2, kp2 = jax.random.split(key, 6)

    in_chn_high, in_chn_low, out_chn = 4, 6, 8

    # Case 1: cat(4, 6, 8, upsample=True)
    N, H, W = 2, 16, 16
    mod1 = CatModule(in_chn_high, in_chn_low, out_chn, upsample=True, key=kp1)
    x1 = jax.random.normal(kx1, (N, in_chn_high, H // 2, W // 2), jnp.float32)
    y1 = jax.random.normal(ky1, (N, in_chn_low, H, W), jnp.float32)
    out1 = jax.block_until_ready(mod1(x1, y1))
    ref1 = jax.block_until_ready(mod1.reference(x1, y1))
    assert out1.shape == (N, out_chn, H, W), out1.shape
    assert jnp.allclose(out1, ref1, atol=1e-4, rtol=1e-4), \
        float(jnp.max(jnp.abs(out1 - ref1)))

    # Case 2: cat(4, 6, 8, upsample=False)
    mod2 = CatModule(in_chn_high, in_chn_low, out_chn, upsample=False, key=kp2)
    x2 = jax.random.normal(kx2, (N, in_chn_high, H, W), jnp.float32)
    y2 = jax.random.normal(ky2, (N, in_chn_low, H, W), jnp.float32)
    out2 = jax.block_until_ready(mod2(x2, y2))
    ref2 = jax.block_until_ready(mod2.reference(x2, y2))
    assert out2.shape == (N, out_chn, H, W), out2.shape
    assert jnp.allclose(out2, ref2, atol=1e-4, rtol=1e-4), \
        float(jnp.max(jnp.abs(out2 - ref2)))

    print("KERNEL_OK")
</pallas_src>

<mosaic_0001>
module attributes {stable_mosaic.version = 11 : i64} {
  func.func @_cat_conv_bn_relu_kernel(%arg0: i32, %arg1: i32, %arg2: memref<2x4x256xf32, #tpu.memory_space<vmem>>, %arg3: memref<2x6x256xf32, #tpu.memory_space<vmem>>, %arg4: memref<8x10xf32, #tpu.memory_space<vmem>>, %arg5: memref<8x1xf32, #tpu.memory_space<vmem>>, %arg6: memref<2x8x256xf32, #tpu.memory_space<vmem>>, %arg7: memref<10x256xf32, #tpu.memory_space<vmem>>) attributes {dimension_semantics = [#tpu.dimension_semantics<parallel>, #tpu.dimension_semantics<parallel>], iteration_bounds = array<i64: 1, 1>, scalar_prefetch = 0 : i64, scratch_operands = 1 : i64, tpu.core_type = #tpu.core_type<tc>, window_params = [{transform_indices = @transform_0, window_bounds = array<i64: 2, 4, 256>}, {transform_indices = @transform_1, window_bounds = array<i64: 2, 6, 256>}, {pipeline_mode = #tpu.pipeline_mode<synchronous>, transform_indices = @transform_2, window_bounds = array<i64: 8, 10>}, {pipeline_mode = #tpu.pipeline_mode<synchronous>, transform_indices = @transform_3, window_bounds = array<i64: 8, 1>}, {transform_indices = @transform_4, window_bounds = array<i64: 2, 8, 256>}]} {
    %c0 = arith.constant 0 : index
    %c0_0 = arith.constant 0 : index
    %0 = vector.load %arg4[%c0, %c0_0] : memref<8x10xf32, #tpu.memory_space<vmem>>, vector<8x10xf32>
    %c0_1 = arith.constant 0 : index
    %c0_2 = arith.constant 0 : index
    %1 = vector.load %arg5[%c0_1, %c0_2] : memref<8x1xf32, #tpu.memory_space<vmem>>, vector<8x1xf32>
    %c0_3 = arith.constant 0 : index
    %c0_4 = arith.constant 0 : index
    %c0_5 = arith.constant 0 : index
    %2 = vector.load %arg2[%c0_3, %c0_4, %c0_5] : memref<2x4x256xf32, #tpu.memory_space<vmem>>, vector<1x4x256xf32>
    %3 = vector.shape_cast %2 : vector<1x4x256xf32> to vector<4x256xf32>
    %c0_6 = arith.constant 0 : index
    %c0_7 = arith.constant 0 : index
    %4 = vector.load %arg7[%c0_6, %c0_7] : memref<10x256xf32, #tpu.memory_space<vmem>>, vector<4x256xf32>
    tpu.vector_store %arg7[%c0_6, %c0_7], %3 {strides = array<i32>} : memref<10x256xf32, #tpu.memory_space<vmem>>, vector<4x256xf32>,
    %c0_8 = arith.constant 0 : index
    %c0_9 = arith.constant 0 : index
    %c0_10 = arith.constant 0 : index
    %5 = vector.load %arg3[%c0_8, %c0_9, %c0_10] : memref<2x6x256xf32, #tpu.memory_space<vmem>>, vector<1x6x256xf32>
    %6 = vector.shape_cast %5 : vector<1x6x256xf32> to vector<6x256xf32>
    %c4 = arith.constant 4 : index
    %c0_11 = arith.constant 0 : index
    %7 = vector.load %arg7[%c4, %c0_11] : memref<10x256xf32, #tpu.memory_space<vmem>>, vector<6x256xf32>
    tpu.vector_store %arg7[%c4, %c0_11], %6 {strides = array<i32>} : memref<10x256xf32, #tpu.memory_space<vmem>>, vector<6x256xf32>,
    %c0_12 = arith.constant 0 : index
    %c0_13 = arith.constant 0 : index
    %8 = vector.load %arg7[%c0_12, %c0_13] : memref<10x256xf32, #tpu.memory_space<vmem>>, vector<10x256xf32>
    %cst = arith.constant dense<0.000000e+00> : vector<8x256xf32>
    %9 = tpu.matmul %0, %8, %cst {dimension_numbers = #tpu.dot_dimension_numbers<[1], [0], [0], [1], [0, 0, 1, 1], [], []>} : vector<8x10xf32>, vector<10x256xf32>, vector<8x256xf32> -> vector<8x256xf32>
    %10 = vector.broadcast %1 : vector<8x1xf32> to vector<8x256xf32>
    %11 = arith.addf %9, %10 : vector<8x256xf32>
    %cst_14 = arith.constant 0.000000e+00 : f32
    %12 = vector.broadcast %cst_14 : f32 to vector<8x256xf32>
    %13 = arith.maximumf %11, %12 : vector<8x256xf32>
    %c0_15 = arith.constant 0 : index
    %c0_16 = arith.constant 0 : index
    %c0_17 = arith.constant 0 : index
    %14 = vector.load %arg6[%c0_15, %c0_16, %c0_17] : memref<2x8x256xf32, #tpu.memory_space<vmem>>, vector<1x8x256xf32>
    %15 = vector.shape_cast %14 : vector<1x8x256xf32> to vector<8x256xf32>
    %16 = vector.shape_cast %13 : vector<8x256xf32> to vector<1x8x256xf32>
    tpu.vector_store %arg6[%c0_15, %c0_16, %c0_17], %16 {strides = array<i32>} : memref<2x8x256xf32, #tpu.memory_space<vmem>>, vector<1x8x256xf32>,
    %c1 = arith.constant 1 : index
    %c0_18 = arith.constant 0 : index
    %c0_19 = arith.constant 0 : index
    %17 = vector.load %arg2[%c1, %c0_18, %c0_19] : memref<2x4x256xf32, #tpu.memory_space<vmem>>, vector<1x4x256xf32>
    %18 = vector.shape_cast %17 : vector<1x4x256xf32> to vector<4x256xf32>
    %c0_20 = arith.constant 0 : index
    %c0_21 = arith.constant 0 : index
    %19 = vector.load %arg7[%c0_20, %c0_21] : memref<10x256xf32, #tpu.memory_space<vmem>>, vector<4x256xf32>
    tpu.vector_store %arg7[%c0_20, %c0_21], %18 {strides = array<i32>} : memref<10x256xf32, #tpu.memory_space<vmem>>, vector<4x256xf32>,
    %c1_22 = arith.constant 1 : index
    %c0_23 = arith.constant 0 : index
    %c0_24 = arith.constant 0 : index
    %20 = vector.load %arg3[%c1_22, %c0_23, %c0_24] : memref<2x6x256xf32, #tpu.memory_space<vmem>>, vector<1x6x256xf32>
    %21 = vector.shape_cast %20 : vector<1x6x256xf32> to vector<6x256xf32>
    %c4_25 = arith.constant 4 : index
    %c0_26 = arith.constant 0 : index
    %22 = vector.load %arg7[%c4_25, %c0_26] : memref<10x256xf32, #tpu.memory_space<vmem>>, vector<6x256xf32>
    tpu.vector_store %arg7[%c4_25, %c0_26], %21 {strides = array<i32>} : memref<10x256xf32, #tpu.memory_space<vmem>>, vector<6x256xf32>,
    %c0_27 = arith.constant 0 : index
    %c0_28 = arith.constant 0 : index
    %23 = vector.load %arg7[%c0_27, %c0_28] : memref<10x256xf32, #tpu.memory_space<vmem>>, vector<10x256xf32>
    %cst_29 = arith.constant dense<0.000000e+00> : vector<8x256xf32>
    %24 = tpu.matmul %0, %23, %cst_29 {dimension_numbers = #tpu.dot_dimension_numbers<[1], [0], [0], [1], [0, 0, 1, 1], [], []>} : vector<8x10xf32>, vector<10x256xf32>, vector<8x256xf32> -> vector<8x256xf32>
    %25 = vector.broadcast %1 : vector<8x1xf32> to vector<8x256xf32>
    %26 = arith.addf %24, %25 : vector<8x256xf32>
    %cst_30 = arith.constant 0.000000e+00 : f32
    %27 = vector.broadcast %cst_30 : f32 to vector<8x256xf32>
    %28 = arith.maximumf %26, %27 : vector<8x256xf32>
    %c1_31 = arith.constant 1 : index
    %c0_32 = arith.constant 0 : index
    %c0_33 = arith.constant 0 : index
    %29 = vector.load %arg6[%c1_31, %c0_32, %c0_33] : memref<2x8x256xf32, #tpu.memory_space<vmem>>, vector<1x8x256xf32>
    %30 = vector.shape_cast %29 : vector<1x8x256xf32> to vector<8x256xf32>
    %31 = vector.shape_cast %28 : vector<8x256xf32> to vector<1x8x256xf32>
    tpu.vector_store %arg6[%c1_31, %c0_32, %c0_33], %31 {strides = array<i32>} : memref<2x8x256xf32, #tpu.memory_space<vmem>>, vector<1x8x256xf32>,
    return
  }
  func.func @transform_0(%arg0: i32, %arg1: i32) -> (i32, i32, i32) {
    %c0_i32 = arith.constant 0 : i32
    %c0_i32_0 = arith.constant 0 : i32
    return %arg0, %c0_i32, %arg1 : i32, i32, i32
  }
  func.func @transform_1(%arg0: i32, %arg1: i32) -> (i32, i32, i32) {
    %c0_i32 = arith.constant 0 : i32
    %c0_i32_0 = arith.constant 0 : i32
    return %arg0, %c0_i32, %arg1 : i32, i32, i32
  }
  func.func @transform_2(%arg0: i32, %arg1: i32) -> (i32, i32) {
    %c0_i32 = arith.constant 0 : i32
    %c0_i32_0 = arith.constant 0 : i32
    %c0_i32_1 = arith.constant 0 : i32
    return %c0_i32, %c0_i32_0 : i32, i32
  }
  func.func @transform_3(%arg0: i32, %arg1: i32) -> (i32, i32) {
    %c0_i32 = arith.constant 0 : i32
    %c0_i32_0 = arith.constant 0 : i32
    %c0_i32_1 = arith.constant 0 : i32
    return %c0_i32, %c0_i32_0 : i32, i32
  }
  func.func @transform_4(%arg0: i32, %arg1: i32) -> (i32, i32, i32) {
    %c0_i32 = arith.constant 0 : i32
    %c0_i32_0 = arith.constant 0 : i32
    return %arg0, %c0_i32, %arg1 : i32, i32, i32
  }
}

</mosaic_0001>

<llo_original>
// kernel: tpu_custom_call.1
$region0: #{tpu_custom_call.1}
  #allocation0 [shape = 'u32[]', space=smem, size = 0x4, offset = 0x4, fixed_abs, tag = 'smem constant byte address 0x4 - core index']
  #allocation1 [shape = 'u32[72,128]{1,0:T(1,128)}', space=vmem, size = 0x9000, scoped, tag = 'internal scratch']
  #allocation2 [shape = 'f32[10,256]{1,0:T(8,128)}', space=vmem, size = 0x4000, scoped, tag = 'scratch operand']
  %s0 = inlined_call_operand.vmem [shape: f32[2,4,256], index: 0, kind: input, shape index: {}]
  %s1 = inlined_call_operand.vmem [shape: f32[2,6,256], index: 1, kind: input, shape index: {}]
  %s2 = inlined_call_operand.vmem [shape: f32[8,10], index: 2, kind: input, shape index: {}]
  %s3 = inlined_call_operand.vmem [shape: f32[8,1], index: 3, kind: input, shape index: {}]
  %s4 = inlined_call_operand.hbm [shape: f32[2,8,256], index: 4, kind: output, shape index: {}]
  %s5 = sld [smem:[#allocation0]]
  $region26: #{tpu_custom_call.1} parent=0
    _
  %s7 = ssub.s32 1, %s5
  %s8 = scalar_select 0, %s7, %s5
  $region1: #{tpu_custom_call.1} parent=0
    #allocation3 [shape = 'u8[16384]{0}', space=vmem, size = 0x4000, scoped, tag = 'output window, operand 0, single buffered']
    #allocation4 [shape = 's32[1]{0}', space=sflag, size = 0x4, scoped, tag = 'scoped memory for tpu_custom_call.1']
    %9 = vsyncpa [#allocation4], 0
    // Predicated region
    $region2: #{tpu_custom_call.1} parent=1 // pred_check
      _
    $region3: #{tpu_custom_call.1} parent=1 // pred_check_branch
      %11 = sbr.rel (0) target = $region5
    $region4: #{tpu_custom_call.1} parent=1 // pred_region
      _
    $region5: #{tpu_custom_call.1} parent=1 // pred_fallthru
      _
    // Predicated region
    $region6: #{tpu_custom_call.1} parent=1 // pred_check
      _
    $region7: #{tpu_custom_call.1} parent=1 // pred_check_branch
      %13 = sbr.rel (0) target = $region9
    $region8: #{tpu_custom_call.1} parent=1 // pred_region
      _
    $region9: #{tpu_custom_call.1} parent=1 // pred_fallthru
      _
    // Predicated region
    $region10: #{tpu_custom_call.1} parent=1 // pred_check
      _
    $region11: #{tpu_custom_call.1} parent=1 // pred_check_branch
      %15 = sbr.rel (0) target = $region13
    $region12: #{tpu_custom_call.1} parent=1 // pred_region
      _
    $region13: #{tpu_custom_call.1} parent=1 // pred_fallthru
      _
    // Predicated region
    $region14: #{tpu_custom_call.1} parent=1 // pred_check
      _
    $region15: #{tpu_custom_call.1} parent=1 // pred_check_branch
      %17 = sbr.rel (0) target = $region17
    $region16: #{tpu_custom_call.1} parent=1 // pred_region
      _
    $region17: #{tpu_custom_call.1} parent=1 // pred_fallthru
      _
    %v18 = vld [vmem:[%s2] sm:$0xff]
    %v19 = vld [vmem:[%s3] sm:$0xff]
    %v20 = vld [vmem:[%s0] sm:$0xff]
    %22 = vst [vmem:[#allocation1] ss:$2 sm:$0xff] %v20
    %v23 = vld.sshfl [vmem:[#allocation1] sm:$0xff pattern:$0x75316420]
    %v24 = vld.sshfl [vmem:[#allocation1 + $0x8] sm:$0xff pattern:$0x75316420]
    %27 = vst [vmem:[#allocation2] sm:$0xf] %v23
    %28 = vst [vmem:[#allocation2 + $0x8] sm:$0xf] %v24
    %v29 = vld [vmem:[%s1] sm:$0x3f]
    %v30 = vld [vmem:[%s1 + $0x8] sm:$0x3f]
    %v33 = vrot.slane %v29, 4
    %v34 = vrot.slane %v30, 4
    %37 = vst [vmem:[#allocation2] sm:$0xf0] %v33
    %38 = vst [vmem:[#allocation2 + $0x8] sm:$0xf0] %v34
    %39 = vst [vmem:[#allocation2 + $0x10] sm:$0x3] %v33
    %40 = vst [vmem:[#allocation2 + $0x18] sm:$0x3] %v34
    %v41 = vld [vmem:[#allocation2] sm:$0xff]
    %v42 = vld [vmem:[#allocation2 + $0x8] sm:$0xff]
    %v43 = vld [vmem:[#allocation2 + $0x10] sm:$0x3]
    %v44 = vld [vmem:[#allocation2 + $0x18] sm:$0x3]
    %46 = vset.pattern.permute.xlu0 0
    %47 = vperm.xlu0 %46, %v19
    %v48 = vpop.permute.xlu0 %47
    %vm50 = vcmask 80896
    %v52 = vsel %vm50, %v18, 0
    %vm54 = vcmask 1041408
    %v56 = vsel %vm54, %v43, 0
    %v59 = vsel %vm54, %v44, 0
    %61 = vmatpush.msra.mxu0 0.0
    %62 = vmatpush.msra.mxu0 0.0
    %63 = vmatpush.msra.mxu0 0.0
    %64 = vmatpush.msra.mxu0 0.0
    %65 = vmatpush.msra.mxu0 0.0
    %66 = vmatpush.msra.mxu0 0.0
    %67 = vmatpush.msra.mxu0 0.0
    %68 = vmatpush.msra.mxu0 0.0
    %69 = vmatpush.msra.mxu0 0.0
    %70 = vmatpush.msra.mxu0 0.0
    %71 = vmatpush.msra.mxu0 0.0
    %72 = vmatpush.msra.mxu0 0.0
    %73 = vmatpush.msra.mxu0 0.0
    %74 = vmatpush.msra.mxu0 0.0
    %75 = vmatpush.msra.mxu0 %v56
    %76 = vmatpush.msra.mxu0 %v41
    %77 = vmatmul.f32.gmra.mxu0 %v52
    %v78 = vpop.f32.mrf.mxu0
    %v79 = vadd.f32 %v48, %v78
    %80 = vdwg.mxu0
    %81 = vmatpush.msra.mxu0 0.0
    %82 = vmatpush.msra.mxu0 0.0
    %83 = vmatpush.msra.mxu0 0.0
    %84 = vmatpush.msra.mxu0 0.0
    %85 = vmatpush.msra.mxu0 0.0
    %86 = vmatpush.msra.mxu0 0.0
    %87 = vmatpush.msra.mxu0 0.0
    %88 = vmatpush.msra.mxu0 0.0
    %89 = vmatpush.msra.mxu0 0.0
    %90 = vmatpush.msra.mxu0 0.0
    %91 = vmatpush.msra.mxu0 0.0
    %92 = vmatpush.msra.mxu0 0.0
    %93 = vmatpush.msra.mxu0 0.0
    %94 = vmatpush.msra.mxu0 0.0
    %95 = vmatpush.msra.mxu0 %v59
    %96 = vmatpush.msra.mxu0 %v42
    %97 = vmatmul.f32.gmra.mxu0 %v52
    %v98 = vpop.f32.mrf.mxu0
    %v99 = vadd.f32 %v48, %v98
    %100 = vdwg.mxu0
    %v101 = vmax.f32 %v79, 0.0
    %v102 = vmax.f32 %v99, 0.0
    %103 = vst [vmem:[#allocation3] sm:$0xff] %v101
    %104 = vst [vmem:[#allocation3 + $0x8] sm:$0xff] %v102
    %s105 = scalar_lea.vmem %s0, 8
    %v106 = vld [vmem:[%s105] sm:$0xff]
    %108 = vst [vmem:[#allocation1] ss:$2 sm:$0xff] %v106
    %v109 = vld.sshfl [vmem:[#allocation1] sm:$0xff pattern:$0x75316420]
    %v110 = vld.sshfl [vmem:[#allocation1 + $0x8] sm:$0xff pattern:$0x75316420]
    %113 = vst [vmem:[#allocation2] sm:$0xf] %v109
    %114 = vst [vmem:[#allocation2 + $0x8] sm:$0xf] %v110
    %s115 = scalar_lea.vmem %s1, 16
    %v116 = vld [vmem:[%s115] sm:$0x3f]
    %v117 = vld [vmem:[%s115 + $0x8] sm:$0x3f]
    %v120 = vrot.slane %v116, 4
    %v121 = vrot.slane %v117, 4
    %124 = vst [vmem:[#allocation2] sm:$0xf0] %v120
    %125 = vst [vmem:[#allocation2 + $0x8] sm:$0xf0] %v121
    %126 = vst [vmem:[#allocation2 + $0x10] sm:$0x3] %v120
    %127 = vst [vmem:[#allocation2 + $0x18] sm:$0x3] %v121
    %v128 = vld [vmem:[#allocation2] sm:$0xff]
    %v129 = vld [vmem:[#allocation2 + $0x8] sm:$0xff]
    %v130 = vld [vmem:[#allocation2 + $0x10] sm:$0x3]
    %v131 = vld [vmem:[#allocation2 + $0x18] sm:$0x3]
    %v133 = vsel %vm54, %v130, 0
    %v136 = vsel %vm54, %v131, 0
    %138 = vmatpush.msra.mxu0 0.0
    %139 = vmatpush.msra.mxu0 0.0
    %140 = vmatpush.msra.mxu0 0.0
    %141 = vmatpush.msra.mxu0 0.0
    %142 = vmatpush.msra.mxu0 0.0
    %143 = vmatpush.msra.mxu0 0.0
    %144 = vmatpush.msra.mxu0 0.0
    %145 = vmatpush.msra.mxu0 0.0
    %146 = vmatpush.msra.mxu0 0.0
    %147 = vmatpush.msra.mxu0 0.0
    %148 = vmatpush.msra.mxu0 0.0
    %149 = vmatpush.msra.mxu0 0.0
    %150 = vmatpush.msra.mxu0 0.0
    %151 = vmatpush.msra.mxu0 0.0
    %152 = vmatpush.msra.mxu0 %v133
    %153 = vmatpush.msra.mxu0 %v128
    %154 = vmatmul.f32.gmra.mxu0 %v52
    %v155 = vpop.f32.mrf.mxu0
    %v156 = vadd.f32 %v48, %v155
    %157 = vdwg.mxu0
    %158 = vmatpush.msra.mxu0 0.0
    %159 = vmatpush.msra.mxu0 0.0
    %160 = vmatpush.msra.mxu0 0.0
    %161 = vmatpush.msra.mxu0 0.0
    %162 = vmatpush.msra.mxu0 0.0
    %163 = vmatpush.msra.mxu0 0.0
    %164 = vmatpush.msra.mxu0 0.0
    %165 = vmatpush.msra.mxu0 0.0
    %166 = vmatpush.msra.mxu0 0.0
    %167 = vmatpush.msra.mxu0 0.0
    %168 = vmatpush.msra.mxu0 0.0
    %169 = vmatpush.msra.mxu0 0.0
    %170 = vmatpush.msra.mxu0 0.0
    %171 = vmatpush.msra.mxu0 0.0
    %172 = vmatpush.msra.mxu0 %v136
    %173 = vmatpush.msra.mxu0 %v129
    %174 = vmatmul.f32.gmra.mxu0 %v52
    %v175 = vpop.f32.mrf.mxu0
    %v176 = vadd.f32 %v48, %v175
    %177 = vdwg.mxu0
    %v178 = vmax.f32 %v156, 0.0
    %v179 = vmax.f32 %v176, 0.0
    %s180 = scalar_lea.vmem [#allocation3], 16
    %181 = vst [vmem:[%s180] sm:$0xff] %v178
    %182 = vst [vmem:[%s180 + $0x8] sm:$0xff] %v179
    // Predicated region
    $region18: #{tpu_custom_call.1} parent=1 // pred_check
      _
    $region19: #{tpu_custom_call.1} parent=1 // pred_check_branch
      %184 = sbr.rel (0) target = $region21
    $region20: #{tpu_custom_call.1} parent=1 // pred_region
      %186 = vsyncadd [#allocation4], 0
      %s187 = sshll.u32 [#allocation3], 4
      %s188 = int_to_ptr.vmem [resolvable:$true] %s187
      %s189 = sshll.u32 %s4, 4
      %s190 = int_to_ptr.hbm [resolvable:$true] %s189
      %195 = dma.vmem_to_hbm [thread:$0]  %s188, 512, %s190, [#allocation4], 256, 256, 16
    $region21: #{tpu_custom_call.1} parent=1 // pred_fallthru
      _
    // Predicated region
    $region22: #{tpu_custom_call.1} parent=1 // pred_check
      _
    $region23: #{tpu_custom_call.1} parent=1 // pred_check_branch
      %197 = sbr.rel (0) target = $region25
    $region24: #{tpu_custom_call.1} parent=1 // pred_region
      %199 = dma.done [#allocation4], 512
    $region25: #{tpu_custom_call.1} parent=1 // pred_fallthru
      _
    %200 = vsyncpa [#allocation4], 1

</llo_original>
